<compile_context>
chip_gen: v7x
topology: tpu7x:2x2x1
jax: 0.10.0
libtpu: 0.0.40
codegen_flags: <defaults>
</compile_context>

<pallas_src>
import functools

import jax
import jax.numpy as jnp
from jax import lax
from jax.experimental import pallas as pl
from jax.experimental.pallas import tpu as pltpu

_EPS = 1e-5      # nn.BatchNorm1d default eps
_SLOPE = 0.01    # nn.LeakyReLU default negative_slope


def _leaky_relu(x):
    return jnp.where(x >= 0, x, _SLOPE * x)


def _round_up(x, m):
    return ((x + m - 1) // m) * m


def _bn_stats(x, count, n_pad_rows):
    """Training-mode BatchNorm1d batch statistics (biased variance, two-pass).

    `x` must be exactly zero on the trailing `n_pad_rows` padding rows; their
    (0 - mean)^2 contribution to the centered sum of squares is removed exactly.
    """
    mean = jnp.sum(x, axis=0, keepdims=True) * (1.0 / count)
    xc = x - mean
    ss = jnp.sum(xc * xc, axis=0, keepdims=True)
    if n_pad_rows:
        ss = ss - float(n_pad_rows) * mean * mean
    var = ss * (1.0 / count)
    return mean, var


def _bn_apply(x, mean, var, gamma, beta):
    return (x - mean) * (lax.rsqrt(var + _EPS) * gamma) + beta


def conv_layer_kernel(act_ref, node_ref, edge_ref, w_ref, bn_ref, *refs,
                      Np, N, M, Fn, Fe):
    if Np != N:
        mask_ref, out_node_ref, out_edge_ref = refs
    else:
        mask_ref = None
        out_node_ref, out_edge_ref = refs

    NM = N * M                  # real row count = BatchNorm batch size (BN1 / edge BN2)
    H = Fn + Fe                 # slab width: gates in lanes [0, H), cores in [H, 2H)
    n_pad_rows = (Np - N) * M   # zero padding rows in the m-major (R, .) arrays

    # --- single fused projection: [self | neighbor | edge] @ [e-gate | n-gate | e-core | n-core]
    z = jnp.dot(act_ref[...], w_ref[...], preferred_element_type=jnp.float32)   # (R, Cp)

    bn = bn_ref[...]                        # packed BN affine params
    g1, b1 = bn[0:1, :], bn[1:2, :]         # fused BN1 gamma/beta (full Cp layout)
    g2, b2 = bn[2:3, :], bn[3:4, :]         # BN2 gamma/beta: [edge(Fe) | node(Fn) | pad]

    # --- fused BN1 over both branches: one full-lane pass (same batch dim for both) ---
    mean1, var1 = _bn_stats(z, NM, n_pad_rows)       # padded rows of z are exactly 0 (no bias)
    zn = _bn_apply(z, mean1, var1, g1, b1)

    # --- gating: one sigmoid / leaky / multiply over whole gate/core slabs ---
    msg = jax.nn.sigmoid(zn[:, :H]) * _leaky_relu(zn[:, H:2 * H])                # (R, H)
    if mask_ref is not None:
        # zero padding rows so they drop out of the neighbor sum and BN2 statistics
        msg = msg * mask_ref[...]

    # ---------------- edge branch (lanes [0, Fe): already output-aligned) ----------------
    msg_e = msg[:, :Fe]
    mean_e, var_e = _bn_stats(msg_e, NM, n_pad_rows)
    msg_e = _bn_apply(msg_e, mean_e, var_e, g2[:, :Fe], b2[:, :Fe])
    out_edge_ref[...] = _leaky_relu(edge_ref[...] + msg_e)

    # ---------------- node branch (lanes [Fe, H)) ----------------
    # Sum over the M neighbor slots of each atom: m-major layout -> pairwise tree over
    # M contiguous, sublane-aligned (Np, Fn) blocks (static-slice views, no relayout).
    parts = [msg[m * Np:(m + 1) * Np, Fe:H] for m in range(M)]
    while len(parts) > 1:
        nxt = [parts[i] + parts[i + 1] for i in range(0, len(parts) - 1, 2)]
        if len(parts) % 2:
            nxt.append(parts[-1])
        parts = nxt
    aggr = parts[0]                                                              # (Np, Fn)
    mean_a, var_a = _bn_stats(aggr, N, Np - N)
    aggr = _bn_apply(aggr, mean_a, var_a, g2[:, Fe:H], b2[:, Fe:H])
    out_node_ref[...] = _leaky_relu(node_ref[...] + aggr)


def conv_layer_pallas(node_fea, edge_fea, edge_idx, params):
    N, Fn = node_fea.shape
    _, M, Fe = edge_fea.shape
    K = 2 * Fn + Fe
    H = Fn + Fe
    Np = _round_up(N, 8)            # sublane-align every m-major block boundary
    R = M * Np
    Cp = _round_up(2 * H, 128)      # fused projection width, padded to full lanes

    node_fea = node_fea.astype(jnp.float32)
    edge_fea = edge_fea.astype(jnp.float32)

    # --- per-row activation [self | neighbor | edge], m-major (row m*Np + i), zero pad rows ---
    # (cheap XLA gather/concat — keeps the kernel free of one-hot matrices and scatters)
    bond = jnp.take(node_fea, edge_idx.astype(jnp.int32), axis=0)                 # (N, M, Fn)
    self_exp = jnp.broadcast_to(node_fea[:, None, :], (N, M, Fn))
    act = jnp.concatenate([self_exp, bond, edge_fea], axis=2)                     # (N, M, K)
    act_mm = jnp.pad(jnp.transpose(act, (1, 0, 2)),
                     ((0, 0), (0, Np - N), (0, 0))).reshape(R, K)
    edge_mm = jnp.pad(jnp.transpose(edge_fea, (1, 0, 2)),
                      ((0, 0), (0, Np - N), (0, 0))).reshape(R, Fe)
    node_p = jnp.pad(node_fea, ((0, Np - N), (0, 0)))

    # --- fused projection weight, columns reordered into the gate/core slab layout:
    #     [edge gate | node gate | edge core | node core | zero pad]              (K, Cp)
    # Linear biases intentionally dropped: training-mode BN cancels them exactly.
    wn_t = params["wn_t"].astype(jnp.float32)      # (K, 2Fn)
    we_t = params["we_t"].astype(jnp.float32)      # (K, 2Fe)
    w = jnp.concatenate([we_t[:, :Fe], wn_t[:, :Fn], we_t[:, Fe:], wn_t[:, Fn:]], axis=1)
    w = jnp.pad(w, ((0, 0), (0, Cp - 2 * H)))

    # --- all BatchNorm affine parameters packed into one (8, Cp) operand ---
    pad1 = jnp.ones((Cp - 2 * H,), jnp.float32)
    pad0 = jnp.zeros((Cp - 2 * H,), jnp.float32)
    g1 = jnp.concatenate([params["g_ebn1"][:Fe], params["g_nbn1"][:Fn],
                          params["g_ebn1"][Fe:], params["g_nbn1"][Fn:], pad1])
    b1 = jnp.concatenate([params["b_ebn1"][:Fe], params["b_nbn1"][:Fn],
                          params["b_ebn1"][Fe:], params["b_nbn1"][Fn:], pad0])
    g2 = jnp.concatenate([params["g_ebn2"], params["g_nbn2"],
                          jnp.ones((Cp - H,), jnp.float32)])
    b2 = jnp.concatenate([params["b_ebn2"], params["b_nbn2"],
                          jnp.zeros((Cp - H,), jnp.float32)])
    bn_pack = jnp.pad(jnp.stack([g1, b1, g2, b2], axis=0), ((0, 4), (0, 0)))       # (8, Cp)

    inputs = [act_mm, node_p, edge_mm, w, bn_pack]
    if Np != N:
        # row mask for the padded atoms (built host/XLA-side; only exists when needed)
        row_mask = jnp.tile((jnp.arange(Np) < N).astype(jnp.float32), (M,)).reshape(R, 1)
        inputs.append(row_mask)

    # --- VMEM budget from actual (tile-padded) buffer sizes, with headroom; v7x-safe cap ---
    def tile_bytes(r, c):
        return 4 * _round_up(r, 8) * _round_up(c, 128)
    need = (tile_bytes(R, K) + tile_bytes(Np, Fn) + tile_bytes(R, Fe)
            + tile_bytes(K, Cp) + tile_bytes(8, Cp) + tile_bytes(R, 1)      # operands
            + tile_bytes(Np, Fn) + tile_bytes(R, Fe)                        # outputs
            + 4 * tile_bytes(R, Cp) + 2 * tile_bytes(R, H))                 # z / centered / msg temps
    try:
        phys = int(pltpu.get_tpu_info().vmem_capacity_bytes)
    except Exception:
        phys = 64 * 1024 * 1024                                             # v7x per-core VMEM
    vmem_limit = int(max(16 << 20, min(2 * need, phys - (8 << 20))))

    flops = 2 * R * K * Cp + 16 * R * Cp + 12 * R * H + 10 * Np * Fn + 8 * R * Fe
    bytes_accessed = 4 * (R * K + Np * Fn + 2 * R * Fe + K * Cp + 8 * Cp + 2 * Np * Fn)
    cost = pl.CostEstimate(flops=int(flops), transcendentals=int(R * H),
                           bytes_accessed=int(bytes_accessed))

    vmem_spec = pl.BlockSpec(memory_space=pltpu.MemorySpace.VMEM)
    kernel = functools.partial(conv_layer_kernel, Np=Np, N=N, M=M, Fn=Fn, Fe=Fe)

    out_node, out_edge = pl.pallas_call(
        kernel,
        out_shape=(
            jax.ShapeDtypeStruct((Np, Fn), jnp.float32),
            jax.ShapeDtypeStruct((R, Fe), jnp.float32),
        ),
        in_specs=[vmem_spec] * len(inputs),
        out_specs=(vmem_spec, vmem_spec),
        compiler_params=pltpu.CompilerParams(vmem_limit_bytes=vmem_limit),
        cost_estimate=cost,
    )(*inputs)

    # back from m-major (M, Np, Fe) to (N, M, Fe), dropping padded atoms
    out_edge = jnp.transpose(out_edge.reshape(M, Np, Fe)[:, :N], (1, 0, 2))
    return out_node[:N], out_edge


def conv_layer_ref(node_fea, edge_fea, edge_idx, params):
    """Pure-JAX reference mirroring the PyTorch forward (training-mode BN, with biases)."""
    N, M = edge_idx.shape
    Fn = node_fea.shape[1]
    Fe = edge_fea.shape[2]
    bond = node_fea[edge_idx, :]                                    # (N, M, Fn)
    self_exp = jnp.broadcast_to(node_fea[:, None, :], (N, M, Fn))
    z = jnp.concatenate([self_exp, bond, edge_fea], axis=2)         # (N, M, 2Fn+Fe)

    def bn(x, g, b):
        mean = jnp.mean(x, axis=0, keepdims=True)
        var = jnp.mean((x - mean) ** 2, axis=0, keepdims=True)
        return (x - mean) / jnp.sqrt(var + _EPS) * g + b

    z_node = z @ params["wn_t"] + params["bn"]
    z_node = bn(z_node.reshape(-1, 2 * Fn), params["g_nbn1"], params["b_nbn1"]).reshape(N, M, 2 * Fn)
    nf, nc = jax.nn.sigmoid(z_node[..., :Fn]), _leaky_relu(z_node[..., Fn:])
    aggr = jnp.sum(nf * nc, axis=1)
    aggr = bn(aggr, params["g_nbn2"], params["b_nbn2"])
    upd_node = _leaky_relu(node_fea + aggr)

    z_edge = z @ params["we_t"] + params["be"]
    z_edge = bn(z_edge.reshape(-1, 2 * Fe), params["g_ebn1"], params["b_ebn1"]).reshape(N, M, 2 * Fe)
    ef, ec = jax.nn.sigmoid(z_edge[..., :Fe]), _leaky_relu(z_edge[..., Fe:])
    msg_edge = bn((ef * ec).reshape(-1, Fe), params["g_ebn2"], params["b_ebn2"]).reshape(N, M, Fe)
    upd_edge = _leaky_relu(edge_fea + msg_edge)
    return upd_node, upd_edge


def init_params(key, node_fea_size, edge_fea_size):
    Fin = 2 * node_fea_size + edge_fea_size
    k_wn, k_bn, k_we, k_be = jax.random.split(key, 4)
    bound = 1.0 / jnp.sqrt(Fin)
    wn = jax.random.uniform(k_wn, (2 * node_fea_size, Fin), jnp.float32, -bound, bound)
    bnode = jax.random.uniform(k_bn, (2 * node_fea_size,), jnp.float32, -bound, bound)
    we = jax.random.uniform(k_we, (2 * edge_fea_size, Fin), jnp.float32, -bound, bound)
    bedge = jax.random.uniform(k_be, (2 * edge_fea_size,), jnp.float32, -bound, bound)
    return {
        "wn_t": wn.T, "bn": bnode,
        "we_t": we.T, "be": bedge,
        # BatchNorm1d default init: gamma=1, beta=0
        "g_nbn1": jnp.ones((2 * node_fea_size,), jnp.float32),
        "b_nbn1": jnp.zeros((2 * node_fea_size,), jnp.float32),
        "g_nbn2": jnp.ones((node_fea_size,), jnp.float32),
        "b_nbn2": jnp.zeros((node_fea_size,), jnp.float32),
        "g_ebn1": jnp.ones((2 * edge_fea_size,), jnp.float32),
        "b_ebn1": jnp.zeros((2 * edge_fea_size,), jnp.float32),
        "g_ebn2": jnp.ones((edge_fea_size,), jnp.float32),
        "b_ebn2": jnp.zeros((edge_fea_size,), jnp.float32),
    }


if __name__ == "__main__":
    def run_case(key, N, M, node_fea_size, edge_fea_size):
        k_node, k_edge, k_idx, k_param = jax.random.split(key, 4)
        node_fea = jax.random.normal(k_node, (N, node_fea_size), jnp.float32)
        edge_fea = jax.random.normal(k_edge, (N, M, edge_fea_size), jnp.float32)
        edge_idx = jax.random.randint(k_idx, (N, M), 0, N, jnp.int32)
        params = init_params(k_param, node_fea_size, edge_fea_size)

        out_node, out_edge = conv_layer_pallas(node_fea, edge_fea, edge_idx, params)
        jax.block_until_ready((out_node, out_edge))

        ref_node, ref_edge = conv_layer_ref(node_fea, edge_fea, edge_idx, params)
        assert out_node.shape == (N, node_fea_size)
        assert out_edge.shape == (N, M, edge_fea_size)
        assert jnp.allclose(out_node, ref_node, atol=1e-4, rtol=1e-4)
        assert jnp.allclose(out_edge, ref_edge, atol=1e-4, rtol=1e-4)

    key = jax.random.PRNGKey(0)
    k1, k2 = jax.random.split(key)
    run_case(k1, N=8, M=4, node_fea_size=32, edge_fea_size=16)    # sublane-aligned N
    run_case(k2, N=12, M=3, node_fea_size=32, edge_fea_size=16)   # N % 8 != 0 -> padded/masked path

    print("KERNEL_OK")
</pallas_src>

<mosaic_0001>
module attributes {stable_mosaic.version = 11 : i64} {
  func.func @conv_layer_kernel(%arg0: memref<32x80xf32, #tpu.memory_space<vmem>>, %arg1: memref<8x32xf32, #tpu.memory_space<vmem>>, %arg2: memref<32x16xf32, #tpu.memory_space<vmem>>, %arg3: memref<80x128xf32, #tpu.memory_space<vmem>>, %arg4: memref<8x128xf32, #tpu.memory_space<vmem>>, %arg5: memref<8x32xf32, #tpu.memory_space<vmem>>, %arg6: memref<32x16xf32, #tpu.memory_space<vmem>>) attributes {dimension_semantics = [], scalar_prefetch = 0 : i64, scratch_operands = 0 : i64, tpu.core_type = #tpu.core_type<tc>} {
    %c0 = arith.constant 0 : index
    %c0_0 = arith.constant 0 : index
    %0 = vector.load %arg0[%c0, %c0_0] : memref<32x80xf32, #tpu.memory_space<vmem>>, vector<32x80xf32>
    %c0_1 = arith.constant 0 : index
    %c0_2 = arith.constant 0 : index
    %1 = vector.load %arg3[%c0_1, %c0_2] : memref<80x128xf32, #tpu.memory_space<vmem>>, vector<80x128xf32>
    %cst = arith.constant dense<0.000000e+00> : vector<32x128xf32>
    %2 = tpu.matmul %0, %1, %cst {dimension_numbers = #tpu.dot_dimension_numbers<[1], [0], [0], [1], [0, 0, 1, 1], [], []>} : vector<32x80xf32>, vector<80x128xf32>, vector<32x128xf32> -> vector<32x128xf32>
    %c0_3 = arith.constant 0 : index
    %c0_4 = arith.constant 0 : index
    %3 = vector.load %arg4[%c0_3, %c0_4] : memref<8x128xf32, #tpu.memory_space<vmem>>, vector<8x128xf32>
    %4 = vector.extract_strided_slice %3 {offsets = [0, 0], sizes = [1, 128], strides = [1, 1]} : vector<8x128xf32> to vector<1x128xf32>
    %5 = vector.extract_strided_slice %3 {offsets = [1, 0], sizes = [1, 128], strides = [1, 1]} : vector<8x128xf32> to vector<1x128xf32>
    %6 = vector.extract_strided_slice %3 {offsets = [2, 0], sizes = [1, 128], strides = [1, 1]} : vector<8x128xf32> to vector<1x128xf32>
    %7 = vector.extract_strided_slice %3 {offsets = [3, 0], sizes = [1, 128], strides = [1, 1]} : vector<8x128xf32> to vector<1x128xf32>
    %cst_5 = arith.constant dense<0.000000e+00> : vector<128xf32>
    %8 = vector.multi_reduction <add>, %2, %cst_5 [0] : vector<32x128xf32> to vector<128xf32>
    %9 = vector.shape_cast %8 : vector<128xf32> to vector<1x128xf32>
    %cst_6 = arith.constant 3.125000e-02 : f32
    %10 = vector.broadcast %cst_6 : f32 to vector<1x128xf32>
    %11 = arith.mulf %9, %10 : vector<1x128xf32>
    %12 = vector.broadcast %11 : vector<1x128xf32> to vector<32x128xf32>
    %13 = arith.subf %2, %12 : vector<32x128xf32>
    %14 = arith.mulf %13, %13 : vector<32x128xf32>
    %cst_7 = arith.constant dense<0.000000e+00> : vector<128xf32>
    %15 = vector.multi_reduction <add>, %14, %cst_7 [0] : vector<32x128xf32> to vector<128xf32>
    %16 = vector.shape_cast %15 : vector<128xf32> to vector<1x128xf32>
    %cst_8 = arith.constant 3.125000e-02 : f32
    %17 = vector.broadcast %cst_8 : f32 to vector<1x128xf32>
    %18 = arith.mulf %16, %17 : vector<1x128xf32>
    %19 = vector.broadcast %11 : vector<1x128xf32> to vector<32x128xf32>
    %20 = arith.subf %2, %19 : vector<32x128xf32>
    %cst_9 = arith.constant 9.99999974E-6 : f32
    %21 = vector.broadcast %cst_9 : f32 to vector<1x128xf32>
    %22 = arith.addf %18, %21 : vector<1x128xf32>
    %23 = math.rsqrt %22 : vector<1x128xf32>
    %24 = arith.mulf %23, %4 : vector<1x128xf32>
    %25 = vector.broadcast %24 : vector<1x128xf32> to vector<32x128xf32>
    %26 = arith.mulf %20, %25 : vector<32x128xf32>
    %27 = vector.broadcast %5 : vector<1x128xf32> to vector<32x128xf32>
    %28 = arith.addf %26, %27 : vector<32x128xf32>
    %29 = vector.extract_strided_slice %28 {offsets = [0, 0], sizes = [32, 48], strides = [1, 1]} : vector<32x128xf32> to vector<32x48xf32>
    %30 = arith.negf %29 : vector<32x48xf32>
    %31 = math.exp %30 : vector<32x48xf32>
    %cst_10 = arith.constant 1.000000e+00 : f32
    %32 = vector.broadcast %cst_10 : f32 to vector<32x48xf32>
    %33 = arith.addf %32, %31 : vector<32x48xf32>
    %34 = arith.divf %32, %33 : vector<32x48xf32>
    %35 = vector.extract_strided_slice %28 {offsets = [0, 48], sizes = [32, 48], strides = [1, 1]} : vector<32x128xf32> to vector<32x48xf32>
    %cst_11 = arith.constant 0.000000e+00 : f32
    %36 = vector.broadcast %cst_11 : f32 to vector<32x48xf32>
    %37 = arith.cmpf oge, %35, %36 : vector<32x48xf32>
    %cst_12 = arith.constant 0.00999999977 : f32
    %38 = vector.broadcast %cst_12 : f32 to vector<32x48xf32>
    %39 = arith.mulf %38, %35 : vector<32x48xf32>
    %40 = arith.select %37, %35, %39 : vector<32x48xi1>, vector<32x48xf32>
    %41 = arith.mulf %34, %40 : vector<32x48xf32>
    %42 = vector.extract_strided_slice %41 {offsets = [0, 0], sizes = [32, 16], strides = [1, 1]} : vector<32x48xf32> to vector<32x16xf32>
    %cst_13 = arith.constant dense<0.000000e+00> : vector<16xf32>
    %43 = vector.multi_reduction <add>, %42, %cst_13 [0] : vector<32x16xf32> to vector<16xf32>
    %44 = vector.shape_cast %43 : vector<16xf32> to vector<1x16xf32>
    %cst_14 = arith.constant 3.125000e-02 : f32
    %45 = vector.broadcast %cst_14 : f32 to vector<1x16xf32>
    %46 = arith.mulf %44, %45 : vector<1x16xf32>
    %47 = vector.broadcast %46 : vector<1x16xf32> to vector<32x16xf32>
    %48 = arith.subf %42, %47 : vector<32x16xf32>
    %49 = arith.mulf %48, %48 : vector<32x16xf32>
    %cst_15 = arith.constant dense<0.000000e+00> : vector<16xf32>
    %50 = vector.multi_reduction <add>, %49, %cst_15 [0] : vector<32x16xf32> to vector<16xf32>
    %51 = vector.shape_cast %50 : vector<16xf32> to vector<1x16xf32>
    %cst_16 = arith.constant 3.125000e-02 : f32
    %52 = vector.broadcast %cst_16 : f32 to vector<1x16xf32>
    %53 = arith.mulf %51, %52 : vector<1x16xf32>
    %54 = vector.extract_strided_slice %6 {offsets = [0, 0], sizes = [1, 16], strides = [1, 1]} : vector<1x128xf32> to vector<1x16xf32>
    %55 = vector.extract_strided_slice %7 {offsets = [0, 0], sizes = [1, 16], strides = [1, 1]} : vector<1x128xf32> to vector<1x16xf32>
    %56 = vector.broadcast %46 : vector<1x16xf32> to vector<32x16xf32>
    %57 = arith.subf %42, %56 : vector<32x16xf32>
    %cst_17 = arith.constant 9.99999974E-6 : f32
    %58 = vector.broadcast %cst_17 : f32 to vector<1x16xf32>
    %59 = arith.addf %53, %58 : vector<1x16xf32>
    %60 = math.rsqrt %59 : vector<1x16xf32>
    %61 = arith.mulf %60, %54 : vector<1x16xf32>
    %62 = vector.broadcast %61 : vector<1x16xf32> to vector<32x16xf32>
    %63 = arith.mulf %57, %62 : vector<32x16xf32>
    %64 = vector.broadcast %55 : vector<1x16xf32> to vector<32x16xf32>
    %65 = arith.addf %63, %64 : vector<32x16xf32>
    %c0_18 = arith.constant 0 : index
    %c0_19 = arith.constant 0 : index
    %66 = vector.load %arg2[%c0_18, %c0_19] : memref<32x16xf32, #tpu.memory_space<vmem>>, vector<32x16xf32>
    %67 = arith.addf %66, %65 : vector<32x16xf32>
    %cst_20 = arith.constant 0.000000e+00 : f32
    %68 = vector.broadcast %cst_20 : f32 to vector<32x16xf32>
    %69 = arith.cmpf oge, %67, %68 : vector<32x16xf32>
    %cst_21 = arith.constant 0.00999999977 : f32
    %70 = vector.broadcast %cst_21 : f32 to vector<32x16xf32>
    %71 = arith.mulf %70, %67 : vector<32x16xf32>
    %72 = arith.select %69, %67, %71 : vector<32x16xi1>, vector<32x16xf32>
    %c0_22 = arith.constant 0 : index
    %c0_23 = arith.constant 0 : index
    %73 = vector.load %arg6[%c0_22, %c0_23] : memref<32x16xf32, #tpu.memory_space<vmem>>, vector<32x16xf32>
    tpu.vector_store %arg6[%c0_22, %c0_23], %72 {strides = array<i32>} : memref<32x16xf32, #tpu.memory_space<vmem>>, vector<32x16xf32>,
    %74 = vector.extract_strided_slice %41 {offsets = [0, 16], sizes = [8, 32], strides = [1, 1]} : vector<32x48xf32> to vector<8x32xf32>
    %75 = vector.extract_strided_slice %41 {offsets = [8, 16], sizes = [8, 32], strides = [1, 1]} : vector<32x48xf32> to vector<8x32xf32>
    %76 = vector.extract_strided_slice %41 {offsets = [16, 16], sizes = [8, 32], strides = [1, 1]} : vector<32x48xf32> to vector<8x32xf32>
    %77 = vector.extract_strided_slice %41 {offsets = [24, 16], sizes = [8, 32], strides = [1, 1]} : vector<32x48xf32> to vector<8x32xf32>
    %78 = arith.addf %74, %75 : vector<8x32xf32>
    %79 = arith.addf %76, %77 : vector<8x32xf32>
    %80 = arith.addf %78, %79 : vector<8x32xf32>
    %cst_24 = arith.constant dense<0.000000e+00> : vector<32xf32>
    %81 = vector.multi_reduction <add>, %80, %cst_24 [0] : vector<8x32xf32> to vector<32xf32>
    %82 = vector.shape_cast %81 : vector<32xf32> to vector<1x32xf32>
    %cst_25 = arith.constant 1.250000e-01 : f32
    %83 = vector.broadcast %cst_25 : f32 to vector<1x32xf32>
    %84 = arith.mulf %82, %83 : vector<1x32xf32>
    %85 = vector.broadcast %84 : vector<1x32xf32> to vector<8x32xf32>
    %86 = arith.subf %80, %85 : vector<8x32xf32>
    %87 = arith.mulf %86, %86 : vector<8x32xf32>
    %cst_26 = arith.constant dense<0.000000e+00> : vector<32xf32>
    %88 = vector.multi_reduction <add>, %87, %cst_26 [0] : vector<8x32xf32> to vector<32xf32>
    %89 = vector.shape_cast %88 : vector<32xf32> to vector<1x32xf32>
    %cst_27 = arith.constant 1.250000e-01 : f32
    %90 = vector.broadcast %cst_27 : f32 to vector<1x32xf32>
    %91 = arith.mulf %89, %90 : vector<1x32xf32>
    %92 = vector.extract_strided_slice %6 {offsets = [0, 16], sizes = [1, 32], strides = [1, 1]} : vector<1x128xf32> to vector<1x32xf32>
    %93 = vector.extract_strided_slice %7 {offsets = [0, 16], sizes = [1, 32], strides = [1, 1]} : vector<1x128xf32> to vector<1x32xf32>
    %94 = vector.broadcast %84 : vector<1x32xf32> to vector<8x32xf32>
    %95 = arith.subf %80, %94 : vector<8x32xf32>
    %cst_28 = arith.constant 9.99999974E-6 : f32
    %96 = vector.broadcast %cst_28 : f32 to vector<1x32xf32>
    %97 = arith.addf %91, %96 : vector<1x32xf32>
    %98 = math.rsqrt %97 : vector<1x32xf32>
    %99 = arith.mulf %98, %92 : vector<1x32xf32>
    %100 = vector.broadcast %99 : vector<1x32xf32> to vector<8x32xf32>
    %101 = arith.mulf %95, %100 : vector<8x32xf32>
    %102 = vector.broadcast %93 : vector<1x32xf32> to vector<8x32xf32>
    %103 = arith.addf %101, %102 : vector<8x32xf32>
    %c0_29 = arith.constant 0 : index
    %c0_30 = arith.constant 0 : index
    %104 = vector.load %arg1[%c0_29, %c0_30] : memref<8x32xf32, #tpu.memory_space<vmem>>, vector<8x32xf32>
    %105 = arith.addf %104, %103 : vector<8x32xf32>
    %cst_31 = arith.constant 0.000000e+00 : f32
    %106 = vector.broadcast %cst_31 : f32 to vector<8x32xf32>
    %107 = arith.cmpf oge, %105, %106 : vector<8x32xf32>
    %cst_32 = arith.constant 0.00999999977 : f32
    %108 = vector.broadcast %cst_32 : f32 to vector<8x32xf32>
    %109 = arith.mulf %108, %105 : vector<8x32xf32>
    %110 = arith.select %107, %105, %109 : vector<8x32xi1>, vector<8x32xf32>
    %c0_33 = arith.constant 0 : index
    %c0_34 = arith.constant 0 : index
    %111 = vector.load %arg5[%c0_33, %c0_34] : memref<8x32xf32, #tpu.memory_space<vmem>>, vector<8x32xf32>
    tpu.vector_store %arg5[%c0_33, %c0_34], %110 {strides = array<i32>} : memref<8x32xf32, #tpu.memory_space<vmem>>, vector<8x32xf32>,
    return
  }
}

</mosaic_0001>

<llo_original>
// kernel: tpu_custom_call.1
$region0: #{tpu_custom_call.1}
  #allocation0 [shape = 'u32[]', space=smem, size = 0x4, offset = 0x4, fixed_abs, tag = 'smem constant byte address 0x4 - core index']
  #allocation1 [shape = 'u32[144,128]{1,0:T(1,128)}', space=vmem, size = 0x12000, scoped, tag = 'internal scratch']
  %s0 = inlined_call_operand.vmem [shape: f32[32,80], index: 0, kind: input, shape index: {}]
  %s1 = inlined_call_operand.vmem [shape: f32[8,32], index: 1, kind: input, shape index: {}]
  %s2 = inlined_call_operand.vmem [shape: f32[32,16], index: 2, kind: input, shape index: {}]
  %s3 = inlined_call_operand.hbm [shape: f32[80,128], index: 3, kind: input, shape index: {}]
  %s4 = inlined_call_operand.vmem [shape: f32[8,128], index: 4, kind: input, shape index: {}]
  %s5 = inlined_call_operand.hbm [shape: f32[8,32], index: 5, kind: output, shape index: {0}]
  %s6 = inlined_call_operand.vmem [shape: f32[32,16], index: 6, kind: output, shape index: {1}]
  %7 = xla_tuple %s5, %s6
  %s8 = sld [smem:[#allocation0]]
  $region42: #{tpu_custom_call.1} parent=0
    _
  %s10 = ssub.s32 1, %s8
  %s11 = scalar_select 0, %s10, %s8
  $region1: #{tpu_custom_call.1} parent=0
    #allocation2 [shape = 'u8[40960]{0}', space=vmem, size = 0xa000, scoped, tag = 'input window, operand 3, single buffered']
    #allocation3 [shape = 's32[1]{0}', space=sflag, size = 0x4, scoped, tag = 'scoped memory for tpu_custom_call.1']
    #allocation4 [shape = 's32[1]{0}', space=sflag, size = 0x4, scoped, tag = 'scoped memory for tpu_custom_call.1']
    #allocation5 [shape = 'u8[4096]{0}', space=vmem, size = 0x1000, scoped, tag = 'output window, operand 0, single buffered']
    %12 = vsyncpa [#allocation3], 0
    %13 = vsyncpa [#allocation4], 0
    // Predicated region
    $region2: #{tpu_custom_call.1} parent=1 // pred_check
      _
    $region3: #{tpu_custom_call.1} parent=1 // pred_check_branch
      %15 = sbr.rel (0) target = $region5
    $region4: #{tpu_custom_call.1} parent=1 // pred_region
      _
    $region5: #{tpu_custom_call.1} parent=1 // pred_fallthru
      _
    // Predicated region
    $region6: #{tpu_custom_call.1} parent=1 // pred_check
      _
    $region7: #{tpu_custom_call.1} parent=1 // pred_check_branch
      %17 = sbr.rel (0) target = $region9
    $region8: #{tpu_custom_call.1} parent=1 // pred_region
      _
    $region9: #{tpu_custom_call.1} parent=1 // pred_fallthru
      _
    // Predicated region
    $region10: #{tpu_custom_call.1} parent=1 // pred_check
      _
    $region11: #{tpu_custom_call.1} parent=1 // pred_check_branch
      %19 = sbr.rel (0) target = $region13
    $region12: #{tpu_custom_call.1} parent=1 // pred_region
      _
    $region13: #{tpu_custom_call.1} parent=1 // pred_fallthru
      _
    // Predicated region
    $region14: #{tpu_custom_call.1} parent=1 // pred_check
      _
    $region15: #{tpu_custom_call.1} parent=1 // pred_check_branch
      %21 = sbr.rel (0) target = $region17
    $region16: #{tpu_custom_call.1} parent=1 // pred_region
      %s23 = ssub.s32 1280, 1280
      %24 = vsyncadd [#allocation3], %s23
      %s25 = sshll.u32 [#allocation2], 4
      %s26 = int_to_ptr.vmem [resolvable:$true] %s25
      %31 = dma.hbm_to_vmem [thread:$0]  %s3, 1280, %s26, [#allocation3], 128, 128, 8
    $region17: #{tpu_custom_call.1} parent=1 // pred_fallthru
      _
    // Predicated region
    $region18: #{tpu_custom_call.1} parent=1 // pred_check
      _
    $region19: #{tpu_custom_call.1} parent=1 // pred_check_branch
      %33 = sbr.rel (0) target = $region21
    $region20: #{tpu_custom_call.1} parent=1 // pred_region
      _
    $region21: #{tpu_custom_call.1} parent=1 // pred_fallthru
      _
    // Predicated region
    $region22: #{tpu_custom_call.1} parent=1 // pred_check
      _
    $region23: #{tpu_custom_call.1} parent=1 // pred_check_branch
      %35 = sbr.rel (0) target = $region25
    $region24: #{tpu_custom_call.1} parent=1 // pred_region
      %36 = dma.done [#allocation3], 1280
    $region25: #{tpu_custom_call.1} parent=1 // pred_fallthru
      _
    %v37 = vld [vmem:[%s0] sm:$0xff]
    %v38 = vld [vmem:[%s0 + $0x8] sm:$0xff]
    %v39 = vld [vmem:[%s0 + $0x10] sm:$0xff]
    %v40 = vld [vmem:[%s0 + $0x18] sm:$0xff]
    %v41 = vld [vmem:[#allocation2] sm:$0xff]
    %v42 = vld [vmem:[#allocation2 + $0x8] sm:$0xff]
    %v43 = vld [vmem:[#allocation2 + $0x10] sm:$0xff]
    %v44 = vld [vmem:[#allocation2 + $0x18] sm:$0xff]
    %v45 = vld [vmem:[#allocation2 + $0x20] sm:$0xff]
    %v46 = vld [vmem:[#allocation2 + $0x28] sm:$0xff]
    %v47 = vld [vmem:[#allocation2 + $0x30] sm:$0xff]
    %v48 = vld [vmem:[#allocation2 + $0x38] sm:$0xff]
    %v49 = vld [vmem:[#allocation2 + $0x40] sm:$0xff]
    %v50 = vld [vmem:[#allocation2 + $0x48] sm:$0xff]
    %vm51 = vcmask 654336
    %v53 = vsel %vm51, %v37, 0
    %v56 = vsel %vm51, %v38, 0
    %v59 = vsel %vm51, %v39, 0
    %v62 = vsel %vm51, %v40, 0
    %64 = vmatprep.subr.mxu0 0.0
    %65 = vmatpush1.msra.mxu0 %v41
    %66 = vmatprep.subr.mxu0 0.0
    %67 = vmatpush1.msra.mxu0 %v42
    %68 = vmatprep.subr.mxu0 0.0
    %69 = vmatpush1.msra.mxu0 %v43
    %70 = vmatprep.subr.mxu0 0.0
    %71 = vmatpush1.msra.mxu0 %v44
    %72 = vmatprep.subr.mxu0 0.0
    %73 = vmatpush1.msra.mxu0 %v45
    %74 = vmatprep.subr.mxu0 0.0
    %75 = vmatpush1.msra.mxu0 %v46
    %76 = vmatprep.subr.mxu0 0.0
    %77 = vmatpush1.msra.mxu0 %v47
    %78 = vmatprep.subr.mxu0 0.0
    %79 = vmatpush1.msra.mxu0 %v48
    %80 = vmatprep.subr.mxu0 0.0
    %81 = vmatpush1.msra.mxu0 %v49
    %82 = vmatprep.subr.mxu0 0.0
    %83 = vmatpush1.msra.mxu0 %v50
    %84 = vmatprep.subr.mxu0 0.0
    %85 = vmatpush1.msra.mxu0 0.0
    %86 = vmatprep.subr.mxu0 0.0
    %87 = vmatpush1.msra.mxu0 0.0
    %88 = vmatprep.subr.mxu0 0.0
    %89 = vmatpush1.msra.mxu0 0.0
    %90 = vmatprep.subr.mxu0 0.0
    %91 = vmatpush1.msra.mxu0 0.0
    %92 = vmatprep.subr.mxu0 0.0
    %93 = vmatpush1.msra.mxu0 0.0
    %94 = vmatprep.subr.mxu0 0.0
    %95 = vmatpush1.msra.mxu0 0.0
    %96 = vmatprep.subr.mxu0 0.0
    %97 = vmatpush1.msra.mxu0 0.0
    %98 = vmatprep.subr.mxu0 0.0
    %99 = vmatpush1.msra.mxu0 0.0
    %100 = vmatprep.subr.mxu0 0.0
    %101 = vmatpush1.msra.mxu0 0.0
    %102 = vmatprep.subr.mxu0 0.0
    %103 = vmatpush1.msra.mxu0 0.0
    %104 = vmatprep.subr.mxu0 0.0
    %105 = vmatpush1.msra.mxu0 0.0
    %106 = vmatprep.subr.mxu0 0.0
    %107 = vmatpush1.msra.mxu0 0.0
    %108 = vmatprep.subr.mxu0 0.0
    %109 = vmatpush1.msra.mxu0 0.0
    %110 = vmatprep.subr.mxu0 0.0
    %111 = vmatpush1.msra.mxu0 0.0
    %112 = vmatprep.subr.mxu0 0.0
    %113 = vmatpush1.msra.mxu0 0.0
    %114 = vmatprep.subr.mxu0 0.0
    %115 = vmatpush1.msra.mxu0 0.0
    %116 = vmatprep.subr.mxu0 0.0
    %117 = vmatpush1.msra.mxu0 0.0
    %118 = vmatprep.subr.mxu0 0.0
    %119 = vmatpush1.msra.mxu0 0.0
    %120 = vmatprep.subr.mxu0 0.0
    %121 = vmatpush1.msra.mxu0 0.0
    %122 = vmatprep.subr.mxu0 0.0
    %123 = vmatpush1.msra.mxu0 0.0
    %124 = vmatprep.subr.mxu0 0.0
    %125 = vmatpush1.msra.mxu0 0.0
    %126 = vmatprep.subr.mxu0 0.0
    %127 = vmatpush1.msra.mxu0 0.0
    %128 = vmatprep.mubr.f32.mxu0 0.0
    %129 = vmatmul.mubr.f32.gmra.mrb[0].mxu0 %v53
    %v130 = vpop.f32.mrb[0].mxu0
    %v131 = vadd.f32 0.0, %v130
    %v132 = vpop.f32.mrb[0].mxu0
    %133 = vmatprep.mubr.f32.mxu0 0.0
    %134 = vmatmul.mubr.f32.gmra.mrb[0].mxu0 %v56
    %v135 = vpop.f32.mrb[0].mxu0
    %v136 = vadd.f32 0.0, %v135
    %v137 = vpop.f32.mrb[0].mxu0
    %138 = vmatprep.mubr.f32.mxu0 0.0
    %139 = vmatmul.mubr.f32.gmra.mrb[0].mxu0 %v59
    %v140 = vpop.f32.mrb[0].mxu0
    %v141 = vadd.f32 0.0, %v140
    %v142 = vpop.f32.mrb[0].mxu0
    %143 = vmatprep.mubr.f32.mxu0 0.0
    %144 = vmatmul.mubr.f32.gmra.mrb[0].mxu0 %v62
    %v145 = vpop.f32.mrb[0].mxu0
    %v146 = vadd.f32 0.0, %v145
    %v147 = vpop.f32.mrb[0].mxu0
    %148 = vdwg.mxu0
    %v149 = vld [vmem:[%s4] sm:$0xff]
    %v150 = vadd.f32 %v131, %v136
    %v151 = vadd.f32 %v150, %v141
    %v152 = vadd.f32 %v151, %v146
    %v153 = vrot.slane %v152, 4
    %v154 = vadd.f32 %v152, %v153
    %v155 = vrot.slane %v154, 2
    %v156 = vadd.f32 %v154, %v155
    %v157 = vrot.slane %v156, 1
    %v158 = vadd.f32 %v156, %v157
    %v159 = vmul.f32 %v158, 0.03125
    %v160 = vsub.f32 %v131, %v159
    %v161 = vsub.f32 %v136, %v159
    %v162 = vsub.f32 %v141, %v159
    %v163 = vsub.f32 %v146, %v159
    %v164 = vmul.f32 %v160, %v160
    %v165 = vmul.f32 %v161, %v161
    %v166 = vmul.f32 %v162, %v162
    %v167 = vmul.f32 %v163, %v163
    %v168 = vadd.f32 %v164, %v165
    %v169 = vadd.f32 %v168, %v166
    %v170 = vadd.f32 %v169, %v167
    %v171 = vrot.slane %v170, 4
    %v172 = vadd.f32 %v170, %v171
    %v173 = vrot.slane %v172, 2
    %v174 = vadd.f32 %v172, %v173
    %v175 = vrot.slane %v174, 1
    %v176 = vadd.f32 %v174, %v175
    %v177 = vmul.f32 %v176, 0.03125
    %v178 = vadd.f32 %v177, 1e-05
    %v179 = vrsqrt.pop %v178
    %v180 = vmul.f32 %v179, %v149
    %v181 = vlaneseq
    %v182 = vshrl.u32 %v181, 7
    %v183 = vsub.s32 0, %v182
    %v184 = vrot.slane %v180, %v183
    %v185 = vmul.f32 %v160, %v184
    %v186 = vmul.f32 %v161, %v184
    %v187 = vmul.f32 %v162, %v184
    %v188 = vmul.f32 %v163, %v184
    %v189 = vlaneseq
    %v190 = vshrl.u32 %v189, 7
    %v191 = vsub.s32 1, %v190
    %v192 = vrot.slane %v149, %v191
    %v193 = vadd.f32 %v185, %v192
    %v194 = vadd.f32 %v186, %v192
    %v195 = vadd.f32 %v187, %v192
    %v196 = vadd.f32 %v188, %v192
    %v197 = vxor.u32 %v193, 2147483648
    %v198 = vxor.u32 %v194, 2147483648
    %v199 = vxor.u32 %v195, 2147483648
    %v200 = vxor.u32 %v196, 2147483648
    %v201 = vmul.f32 %v197, 1.442695
    %v202 = vpow.pop %v201
    %v203 = vmul.f32 %v198, 1.442695
    %v204 = vpow.pop %v203
    %v205 = vmul.f32 %v199, 1.442695
    %v206 = vpow.pop %v205
    %v207 = vmul.f32 %v200, 1.442695
    %v208 = vpow.pop %v207
    %v209 = vadd.f32 %v202, 1.0
    %v210 = vadd.f32 %v204, 1.0
    %v211 = vadd.f32 %v206, 1.0
    %v212 = vadd.f32 %v208, 1.0
    %v213 = vrcp.pop %v209
    %v214 = vmul.f32 1.0, %v213
    %v215 = vrcp.pop %v210
    %v216 = vmul.f32 1.0, %v215
    %v217 = vrcp.pop %v211
    %v218 = vmul.f32 1.0, %v217
    %v219 = vrcp.pop %v212
    %v220 = vmul.f32 1.0, %v219
    %vm221 = vcmp.ge.f32.partialorder %v193, 0.0
    %vm222 = vcmp.ge.f32.partialorder %v194, 0.0
    %vm223 = vcmp.ge.f32.partialorder %v195, 0.0
    %vm224 = vcmp.ge.f32.partialorder %v196, 0.0
    %v225 = vmul.f32 %v193, 0.01
    %v226 = vmul.f32 %v194, 0.01
    %v227 = vmul.f32 %v195, 0.01
    %v228 = vmul.f32 %v196, 0.01
    %v229 = vsel %vm221, %v193, %v225
    %v230 = vsel %vm222, %v194, %v226
    %v231 = vsel %vm223, %v195, %v227
    %v232 = vsel %vm224, %v196, %v228
    %237 = vrot.lane.b32.xlu0 %v229, 80
    %v238 = vpop.permute.xlu0 %237
    %239 = vrot.lane.b32.xlu0 %v230, 80
    %v240 = vpop.permute.xlu0 %239
    %241 = vrot.lane.b32.xlu0 %v231, 80
    %v242 = vpop.permute.xlu0 %241
    %243 = vrot.lane.b32.xlu0 %v232, 80
    %v244 = vpop.permute.xlu0 %243
    %v249 = vmul.f32 %v214, %v238
    %v250 = vmul.f32 %v216, %v240
    %v251 = vmul.f32 %v218, %v242
    %v252 = vmul.f32 %v220, %v244
    %vm253 = vcmask 130048
    %v254 = vsel %vm253, %v249, 0.0
    %v255 = vsel %vm253, %v250, 0.0
    %v256 = vadd.f32 %v254, %v255
    %v257 = vsel %vm253, %v251, 0.0
    %v258 = vadd.f32 %v256, %v257
    %v259 = vsel %vm253, %v252, 0.0
    %v260 = vadd.f32 %v258, %v259
    %v261 = vrot.slane %v260, 4
    %v262 = vadd.f32 %v260, %v261
    %v263 = vrot.slane %v262, 2
    %v264 = vadd.f32 %v262, %v263
    %v265 = vrot.slane %v264, 1
    %v266 = vadd.f32 %v264, %v265
    %v267 = vmul.f32 %v266, 0.03125
    %v268 = vsub.f32 %v249, %v267
    %v269 = vsub.f32 %v250, %v267
    %v270 = vsub.f32 %v251, %v267
    %v271 = vsub.f32 %v252, %v267
    %v272 = vmul.f32 %v268, %v268
    %v273 = vmul.f32 %v269, %v269
    %v274 = vmul.f32 %v270, %v270
    %v275 = vmul.f32 %v271, %v271
    %v276 = vsel %vm253, %v272, 0.0
    %v277 = vsel %vm253, %v273, 0.0
    %v278 = vadd.f32 %v276, %v277
    %v279 = vsel %vm253, %v274, 0.0
    %v280 = vadd.f32 %v278, %v279
    %v281 = vsel %vm253, %v275, 0.0
    %v282 = vadd.f32 %v280, %v281
    %v283 = vrot.slane %v282, 4
    %v284 = vadd.f32 %v282, %v283
    %v285 = vrot.slane %v284, 2
    %v286 = vadd.f32 %v284, %v285
    %v287 = vrot.slane %v286, 1
    %v288 = vadd.f32 %v286, %v287
    %v289 = vmul.f32 %v288, 0.03125
    %v290 = vadd.f32 %v289, 1e-05
    %v291 = vrsqrt.pop %v290
    %v292 = vmul.f32 %v291, %v149
    %v293 = vlaneseq
    %v294 = vshrl.u32 %v293, 7
    %v295 = vsub.s32 2, %v294
    %v296 = vrot.slane %v292, %v295
    %v297 = vmul.f32 %v268, %v296
    %v298 = vmul.f32 %v269, %v296
    %v299 = vmul.f32 %v270, %v296
    %v300 = vmul.f32 %v271, %v296
    %v301 = vlaneseq
    %v302 = vshrl.u32 %v301, 7
    %v303 = vsub.s32 3, %v302
    %v304 = vrot.slane %v149, %v303
    %v305 = vadd.f32 %v297, %v304
    %v306 = vadd.f32 %v298, %v304
    %v307 = vadd.f32 %v299, %v304
    %v308 = vadd.f32 %v300, %v304
    %v309 = vld [vmem:[%s2] sm:$0xff]
    %v310 = vld [vmem:[%s2 + $0x8] sm:$0xff]
    %v311 = vld [vmem:[%s2 + $0x10] sm:$0xff]
    %v312 = vld [vmem:[%s2 + $0x18] sm:$0xff]
    %v313 = vadd.f32 %v309, %v305
    %v314 = vadd.f32 %v310, %v306
    %v315 = vadd.f32 %v311, %v307
    %v316 = vadd.f32 %v312, %v308
    %vm317 = vcmp.ge.f32.partialorder %v313, 0.0
    %vm318 = vcmp.ge.f32.partialorder %v314, 0.0
    %vm319 = vcmp.ge.f32.partialorder %v315, 0.0
    %vm320 = vcmp.ge.f32.partialorder %v316, 0.0
    %v321 = vmul.f32 %v313, 0.01
    %v322 = vmul.f32 %v314, 0.01
    %v323 = vmul.f32 %v315, 0.01
    %v324 = vmul.f32 %v316, 0.01
    %v325 = vsel %vm317, %v313, %v321
    %v326 = vsel %vm318, %v314, %v322
    %v327 = vsel %vm319, %v315, %v323
    %v328 = vsel %vm320, %v316, %v324
    %329 = vst.msk [vmem:[%s6] sm:$0xff] %vm253, %v325
    %330 = vst.msk [vmem:[%s6 + $0x8] sm:$0xff] %vm253, %v326
    %331 = vst.msk [vmem:[%s6 + $0x10] sm:$0xff] %vm253, %v327
    %332 = vst.msk [vmem:[%s6 + $0x18] sm:$0xff] %vm253, %v328
    %v333 = vadd.f32 %v249, %v250
    %v334 = vadd.f32 %v251, %v252
    %v335 = vadd.f32 %v333, %v334
    %vm336 = vcmask 392320
    %v337 = vsel %vm336, %v335, 0.0
    %v338 = vrot.slane %v337, 4
    %v339 = vadd.f32 %v337, %v338
    %v340 = vrot.slane %v339, 2
    %v341 = vadd.f32 %v339, %v340
    %v342 = vrot.slane %v341, 1
    %v343 = vadd.f32 %v341, %v342
    %v344 = vmul.f32 %v343, 0.125
    %v345 = vsub.f32 %v335, %v344
    %v346 = vmul.f32 %v345, %v345
    %v347 = vsel %vm336, %v346, 0.0
    %v348 = vrot.slane %v347, 4
    %v349 = vadd.f32 %v347, %v348
    %v350 = vrot.slane %v349, 2
    %v351 = vadd.f32 %v349, %v350
    %v352 = vrot.slane %v351, 1
    %v353 = vadd.f32 %v351, %v352
    %v354 = vmul.f32 %v353, 0.125
    %v355 = vadd.f32 %v354, 1e-05
    %v356 = vrsqrt.pop %v355
    %v357 = vmul.f32 %v356, %v149
    %v358 = vlaneseq
    %v359 = vshrl.u32 %v358, 7
    %v360 = vsub.s32 2, %v359
    %v361 = vrot.slane %v357, %v360
    %v362 = vmul.f32 %v345, %v361
    %v363 = vadd.f32 %v362, %v304
    %v364 = vld [vmem:[%s1] sm:$0xff]
    %366 = vrot.lane.b32.xlu0 %v363, 112
    %v367 = vpop.permute.xlu0 %366
    %v369 = vadd.f32 %v364, %v367
    %vm370 = vcmp.ge.f32.partialorder %v369, 0.0
    %v371 = vmul.f32 %v369, 0.01
    %v372 = vsel %vm370, %v369, %v371
    %vm373 = vcmask 261120
    %374 = vst.msk [vmem:[#allocation5] sm:$0xff] %vm373, %v372
    // Predicated region
    $region26: #{tpu_custom_call.1} parent=1 // pred_check
      _
    $region27: #{tpu_custom_call.1} parent=1 // pred_check_branch
      %376 = sbr.rel (0) target = $region29
    $region28: #{tpu_custom_call.1} parent=1 // pred_region
      %s378 = ssub.s32 128, 128
      %379 = vsyncadd [#allocation4], %s378
      %s381 = sshll.u32 [#allocation5], 4
      %s382 = int_to_ptr.vmem [resolvable:$true] %s381
      %384 = dma.vmem_to_hbm [thread:$0]  %s382, 128, %s5, [#allocation4]
    $region29: #{tpu_custom_call.1} parent=1 // pred_fallthru
      _
    // Predicated region
    $region30: #{tpu_custom_call.1} parent=1 // pred_check
      _
    $region31: #{tpu_custom_call.1} parent=1 // pred_check_branch
      %386 = sbr.rel (0) target = $region33
    $region32: #{tpu_custom_call.1} parent=1 // pred_region
      _
    $region33: #{tpu_custom_call.1} parent=1 // pred_fallthru
      _
    // Predicated region
    $region34: #{tpu_custom_call.1} parent=1 // pred_check
      _
    $region35: #{tpu_custom_call.1} parent=1 // pred_check_branch
      %388 = sbr.rel (0) target = $region37
    $region36: #{tpu_custom_call.1} parent=1 // pred_region
      %389 = dma.done [#allocation4], 128
    $region37: #{tpu_custom_call.1} parent=1 // pred_fallthru
      _
    // Predicated region
    $region38: #{tpu_custom_call.1} parent=1 // pred_check
      _
    $region39: #{tpu_custom_call.1} parent=1 // pred_check_branch
      %391 = sbr.rel (0) target = $region41
    $region40: #{tpu_custom_call.1} parent=1 // pred_region
      _
    $region41: #{tpu_custom_call.1} parent=1 // pred_fallthru
      _
    %392 = vsyncpa [#allocation3], 1
    %393 = vsyncpa [#allocation4], 1

</llo_original>
